<compile_context>
chip_gen: v5e
topology: v5e:2x2
jax: 0.10.0
libtpu: 0.0.40
codegen_flags: <defaults>
</compile_context>

<pallas_src>
import functools

import jax
import jax.numpy as jnp
from jax.experimental import pallas as pl
from jax.experimental.pallas import tpu as pltpu


def rotation_gcn_kernel(x_ref, rkron_ref, wc_ref, bias2d_ref, o_ref, *, x_first):
    """One (batch n, time-tile t) slab per grid step.

    x_ref     : (1, C, L)      VMEM, L = tT * V_pad (lane-dense)
    rkron_ref : (L, L)         VMEM, I_L + kron(I_tT, Wr_sum^T)  (rotation + residual)
    wc_ref    : (C_out, C)     VMEM, BN-scale-folded 1x1 channel-mix weights
    bias2d_ref: (C_out, L)     VMEM, folded rotation-bias/conv-bias/BN-shift slab
    o_ref     : (1, C_out, L)  VMEM
    """
    x = x_ref[0]                                                          # (C, L)

    if x_first:
        # (C, L) @ (L, L) then (C_out, C) @ (C, L)  -- L^2 work scales with C.
        z = jnp.dot(x, rkron_ref[...], preferred_element_type=jnp.float32)
        out = jnp.dot(wc_ref[...], z, preferred_element_type=jnp.float32)
    else:
        # (C_out, C) @ (C, L) then (C_out, L) @ (L, L) -- L^2 work scales with C_out.
        y = jnp.dot(wc_ref[...], x, preferred_element_type=jnp.float32)
        out = jnp.dot(y, rkron_ref[...], preferred_element_type=jnp.float32)

    # Folded rotation-bias + conv-bias + inference-BN shift, then ReLU. One store.
    out = out + bias2d_ref[...]
    o_ref[0] = jnp.maximum(out, 0.0).astype(o_ref.dtype)


def _choose_tiling(T, V, max_lanes=512):
    """Return (tT, V_pad): tT divides T, L = tT * V_pad is a multiple of 128 and
    <= max_lanes, preferring no node padding and the SMALLEST legal L (minimum
    kron waste, minimum weight VMEM)."""

    def smallest_tt(vp):
        for tt in range(1, T + 1):
            if T % tt == 0 and (tt * vp) % 128 == 0 and tt * vp <= max_lanes:
                return tt
        return None

    tt = smallest_tt(V)
    if tt is not None:
        return tt, V

    # Padded-V path (e.g. skeleton V=25 -> 32): pad to the next power of two.
    vp = 1
    while vp < V:
        vp *= 2
    while vp <= 128:
        tt = smallest_tt(vp)
        if tt is not None:
            return tt, vp
        vp *= 2

    # Last resort: one time step per tile, V padded to a multiple of 128.
    return 1, ((V + 127) // 128) * 128


def rotation_gcn_forward(x, wr_sum, br_sum, wc, bc, gamma, beta, rmean, rvar, eps=1e-5):
    N, C, T, V = x.shape
    C_out = wc.shape[0]

    tT, V_pad = _choose_tiling(T, V)
    L = tT * V_pad

    # Zero-pad the node axis if needed (padded output lanes are dropped below).
    if V_pad != V:
        pad = V_pad - V
        x = jnp.pad(x, ((0, 0), (0, 0), (0, 0), (0, pad)))
        wr_sum = jnp.pad(wr_sum, ((0, pad), (0, pad)))
        br_sum = jnp.pad(br_sum, ((0, pad),))

    # ---- Wrapper-side folds (trace-time constants) ----
    # Inference BN + conv bias -> per-output-channel affine.
    scale = gamma / jnp.sqrt(rvar + eps)                    # (C_out,)
    shift = (bc - rmean) * scale + beta                     # (C_out,)
    wc_scaled = scale[:, None] * wc                         # (C_out, C)  BN scale folded

    # Residual folded into the block-diagonal rotation weight.
    rkron_plus = (jnp.eye(L, dtype=jnp.float32)
                  + jnp.kron(jnp.eye(tT, dtype=jnp.float32),
                             wr_sum.T.astype(jnp.float32)))            # (L, L)

    # Entire bias path folded into one additive slab:
    #   wc_scaled @ (x @ rkron_plus + br) + shift
    #     = wc_scaled @ (x @ rkron_plus) + wc_scaled.sum(1)[:,None]*br + shift[:,None]
    br_tile = jnp.tile(br_sum.astype(jnp.float32), tT)                 # (L,)
    bias2d = (wc_scaled.sum(axis=1)[:, None] * br_tile[None, :]
              + shift[:, None]).astype(jnp.float32)                    # (C_out, L)

    # Matmul weights follow the activation dtype (bf16 x -> bf16 weights,
    # f32 accumulation on the MXU); f32 x keeps exact f32 weights.
    w_dtype = x.dtype
    rkron_plus = rkron_plus.astype(w_dtype)
    wc_scaled = wc_scaled.astype(w_dtype)

    x2 = x.reshape(N, C, T * V_pad)                 # free trailing-dim merge
    x_first = C <= C_out                            # run the L^2 matmul on the smaller channel dim

    # Advisory cost estimate (true MXU flops + streamed bytes).
    steps = N * (T // tT)
    if x_first:
        flops = steps * (2 * C * L * L + 2 * C_out * C * L)
    else:
        flops = steps * (2 * C_out * C * L + 2 * C_out * L * L)
    bytes_accessed = (x2.size * x2.dtype.itemsize
                      + N * C_out * T * V_pad * x.dtype.itemsize
                      + rkron_plus.size * rkron_plus.dtype.itemsize
                      + wc_scaled.size * wc_scaled.dtype.itemsize
                      + bias2d.size * 4)

    # NOTE: with tiny channel counts (C < 8) packing several batches per grid
    # step into the sublane dim would raise vreg/MXU-M utilization; at these
    # shapes the kernel is HBM-streaming-bound so this is left as future work.
    out2 = pl.pallas_call(
        functools.partial(rotation_gcn_kernel, x_first=x_first),
        out_shape=jax.ShapeDtypeStruct((N, C_out, T * V_pad), x.dtype),
        grid_spec=pltpu.PrefetchScalarGridSpec(
            num_scalar_prefetch=0,
            grid=(N, T // tT),
            in_specs=[
                pl.BlockSpec((1, C, L), lambda n, t: (n, 0, t)),
                pl.BlockSpec((L, L), lambda n, t: (0, 0)),
                pl.BlockSpec((C_out, C), lambda n, t: (0, 0)),
                pl.BlockSpec((C_out, L), lambda n, t: (0, 0)),
            ],
            out_specs=pl.BlockSpec((1, C_out, L), lambda n, t: (n, 0, t)),
        ),
        compiler_params=pltpu.CompilerParams(
            dimension_semantics=("parallel", "parallel"),
            vmem_limit_bytes=32 * 1024 * 1024,
        ),
        cost_estimate=pl.CostEstimate(
            flops=flops, transcendentals=0, bytes_accessed=bytes_accessed),
    )(x2, rkron_plus, wc_scaled, bias2d)

    out = out2.reshape(N, C_out, T, V_pad)
    if V_pad != V:
        out = out[..., :V]
    return out


def rotation_gcn_reference(x, wr_sum, br_sum, wc, bc, gamma, beta, rmean, rvar, eps=1e-5):
    """Pure-JAX reference matching the PyTorch forward (eval-mode BN)."""
    rot = jnp.einsum("nctv,wv->nctw", x, wr_sum) + br_sum
    z = x + rot
    conv = jnp.einsum("nctv,oc->notv", z, wc) + bc[None, :, None, None]
    bn = (conv - rmean[None, :, None, None]) / jnp.sqrt(rvar + eps)[None, :, None, None]
    bn = bn * gamma[None, :, None, None] + beta[None, :, None, None]
    return jnp.maximum(bn, 0.0)


if __name__ == "__main__":
    # Small shapes consistent with the module: x is (N, C, T, V).
    N, C, T, V = 2, 4, 8, 16
    C_out, num_heads = 8, 13

    key = jax.random.PRNGKey(0)
    ks = jax.random.split(key, 8)

    x = jax.random.normal(ks[0], (N, C, T, V), dtype=jnp.float32)

    # Deterministic synthetic parameters (module __init__ shapes).
    wr_heads = jax.random.normal(ks[1], (num_heads, V, V), dtype=jnp.float32) * 0.1
    br_heads = jax.random.normal(ks[2], (num_heads, V), dtype=jnp.float32) * 0.1
    wr_sum = wr_heads.sum(axis=0)          # (V, V)  -- the 1x1 convs over V sum to one matrix
    br_sum = br_heads.sum(axis=0)          # (V,)

    wc = jax.random.normal(ks[3], (C_out, C), dtype=jnp.float32) * 0.2   # Conv2d(C, C_out, 1x1)
    bc = jax.random.normal(ks[4], (C_out,), dtype=jnp.float32) * 0.1

    gamma = jax.random.uniform(ks[5], (C_out,), dtype=jnp.float32, minval=0.5, maxval=1.5)
    beta = jax.random.normal(ks[6], (C_out,), dtype=jnp.float32) * 0.1
    rmean = jnp.zeros((C_out,), dtype=jnp.float32)
    rvar = jnp.ones((C_out,), dtype=jnp.float32)

    out = rotation_gcn_forward(x, wr_sum, br_sum, wc, bc, gamma, beta, rmean, rvar)
    out = jax.block_until_ready(out)

    ref = rotation_gcn_reference(x, wr_sum, br_sum, wc, bc, gamma, beta, rmean, rvar)
    ref = jax.block_until_ready(ref)

    assert out.shape == (N, C_out, T, V), out.shape
    assert jnp.allclose(out, ref, rtol=2e-3, atol=2e-3), float(jnp.max(jnp.abs(out - ref)))

    print("KERNEL_OK")
</pallas_src>

<mosaic_0001>
module attributes {stable_mosaic.version = 11 : i64} {
  func.func @rotation_gcn_kernel(%arg0: i32, %arg1: i32, %arg2: memref<1x4x128xf32, #tpu.memory_space<vmem>>, %arg3: memref<128x128xf32, #tpu.memory_space<vmem>>, %arg4: memref<8x4xf32, #tpu.memory_space<vmem>>, %arg5: memref<8x128xf32, #tpu.memory_space<vmem>>, %arg6: memref<1x8x128xf32, #tpu.memory_space<vmem>>) attributes {dimension_semantics = [#tpu.dimension_semantics<parallel>, #tpu.dimension_semantics<parallel>], iteration_bounds = array<i64: 2, 1>, scalar_prefetch = 0 : i64, scratch_operands = 0 : i64, tpu.core_type = #tpu.core_type<tc>, window_params = [{transform_indices = @transform_0, window_bounds = array<i64: 1, 4, 128>}, {pipeline_mode = #tpu.pipeline_mode<synchronous>, transform_indices = @transform_1, window_bounds = array<i64: 128, 128>}, {pipeline_mode = #tpu.pipeline_mode<synchronous>, transform_indices = @transform_2, window_bounds = array<i64: 8, 4>}, {pipeline_mode = #tpu.pipeline_mode<synchronous>, transform_indices = @transform_3, window_bounds = array<i64: 8, 128>}, {transform_indices = @transform_4, window_bounds = array<i64: 1, 8, 128>}]} {
    %c0 = arith.constant 0 : index
    %c0_0 = arith.constant 0 : index
    %c0_1 = arith.constant 0 : index
    %0 = vector.load %arg2[%c0, %c0_0, %c0_1] : memref<1x4x128xf32, #tpu.memory_space<vmem>>, vector<1x4x128xf32>
    %1 = vector.shape_cast %0 : vector<1x4x128xf32> to vector<4x128xf32>
    %c0_2 = arith.constant 0 : index
    %c0_3 = arith.constant 0 : index
    %2 = vector.load %arg3[%c0_2, %c0_3] : memref<128x128xf32, #tpu.memory_space<vmem>>, vector<128x128xf32>
    %cst = arith.constant dense<0.000000e+00> : vector<4x128xf32>
    %3 = tpu.matmul %1, %2, %cst {dimension_numbers = #tpu.dot_dimension_numbers<[1], [0], [0], [1], [0, 0, 1, 1], [], []>} : vector<4x128xf32>, vector<128x128xf32>, vector<4x128xf32> -> vector<4x128xf32>
    %c0_4 = arith.constant 0 : index
    %c0_5 = arith.constant 0 : index
    %4 = vector.load %arg4[%c0_4, %c0_5] : memref<8x4xf32, #tpu.memory_space<vmem>>, vector<8x4xf32>
    %cst_6 = arith.constant dense<0.000000e+00> : vector<8x128xf32>
    %5 = tpu.matmul %4, %3, %cst_6 {dimension_numbers = #tpu.dot_dimension_numbers<[1], [0], [0], [1], [0, 0, 1, 1], [], []>} : vector<8x4xf32>, vector<4x128xf32>, vector<8x128xf32> -> vector<8x128xf32>
    %c0_7 = arith.constant 0 : index
    %c0_8 = arith.constant 0 : index
    %6 = vector.load %arg5[%c0_7, %c0_8] : memref<8x128xf32, #tpu.memory_space<vmem>>, vector<8x128xf32>
    %7 = arith.addf %5, %6 : vector<8x128xf32>
    %cst_9 = arith.constant 0.000000e+00 : f32
    %8 = vector.broadcast %cst_9 : f32 to vector<8x128xf32>
    %9 = arith.maximumf %7, %8 : vector<8x128xf32>
    %c0_10 = arith.constant 0 : index
    %c0_11 = arith.constant 0 : index
    %c0_12 = arith.constant 0 : index
    %10 = vector.load %arg6[%c0_10, %c0_11, %c0_12] : memref<1x8x128xf32, #tpu.memory_space<vmem>>, vector<1x8x128xf32>
    %11 = vector.shape_cast %10 : vector<1x8x128xf32> to vector<8x128xf32>
    %12 = vector.shape_cast %9 : vector<8x128xf32> to vector<1x8x128xf32>
    tpu.vector_store %arg6[%c0_10, %c0_11, %c0_12], %12 {strides = array<i32>} : memref<1x8x128xf32, #tpu.memory_space<vmem>>, vector<1x8x128xf32>,
    return
  }
  func.func @transform_0(%arg0: i32, %arg1: i32) -> (i32, i32, i32) {
    %c0_i32 = arith.constant 0 : i32
    %c0_i32_0 = arith.constant 0 : i32
    return %arg0, %c0_i32, %arg1 : i32, i32, i32
  }
  func.func @transform_1(%arg0: i32, %arg1: i32) -> (i32, i32) {
    %c0_i32 = arith.constant 0 : i32
    %c0_i32_0 = arith.constant 0 : i32
    %c0_i32_1 = arith.constant 0 : i32
    return %c0_i32, %c0_i32_0 : i32, i32
  }
  func.func @transform_2(%arg0: i32, %arg1: i32) -> (i32, i32) {
    %c0_i32 = arith.constant 0 : i32
    %c0_i32_0 = arith.constant 0 : i32
    %c0_i32_1 = arith.constant 0 : i32
    return %c0_i32, %c0_i32_0 : i32, i32
  }
  func.func @transform_3(%arg0: i32, %arg1: i32) -> (i32, i32) {
    %c0_i32 = arith.constant 0 : i32
    %c0_i32_0 = arith.constant 0 : i32
    %c0_i32_1 = arith.constant 0 : i32
    return %c0_i32, %c0_i32_0 : i32, i32
  }
  func.func @transform_4(%arg0: i32, %arg1: i32) -> (i32, i32, i32) {
    %c0_i32 = arith.constant 0 : i32
    %c0_i32_0 = arith.constant 0 : i32
    return %arg0, %c0_i32, %arg1 : i32, i32, i32
  }
}

</mosaic_0001>

<llo_original>
// kernel: tpu_custom_call.1
$region0: #{tpu_custom_call.1}
  #allocation0 [shape = 'u32[]', space=smem, size = 0x4, offset = 0x4, fixed_abs, tag = 'smem constant byte address 0x4 - core index']
  #allocation1 [shape = 'u32[72,128]{1,0:T(1,128)}', space=vmem, size = 0x9000, scoped, tag = 'internal scratch']
  %s0 = inlined_call_operand.vmem [shape: f32[2,4,128], index: 0, kind: input, shape index: {}]
  %s1 = inlined_call_operand.hbm [shape: f32[128,128], index: 1, kind: input, shape index: {}]
  %s2 = inlined_call_operand.vmem [shape: f32[8,4], index: 2, kind: input, shape index: {}]
  %s3 = inlined_call_operand.hbm [shape: f32[8,128], index: 3, kind: input, shape index: {}]
  %s4 = inlined_call_operand.hbm [shape: f32[2,8,128], index: 4, kind: output, shape index: {}]
  %s5 = sld [smem:[#allocation0]]
  $region57: #{tpu_custom_call.1} parent=0
    _
  %s7 = ssub.s32 1, %s5
  %s8 = scalar_select 0, %s7, %s5
  $region1: #{tpu_custom_call.1} parent=0
    #allocation2 [shape = 'u8[65536]{0}', space=vmem, size = 0x10000, scoped, tag = 'input window, operand 1, single buffered']
    #allocation3 [shape = 's32[2]{0}', space=sflag, size = 0x8, scoped, tag = 'scoped memory for tpu_custom_call.1']
    #allocation4 [shape = 's32[2]{0}', space=sflag, size = 0x8, scoped, tag = 'scoped memory for tpu_custom_call.1']
    #allocation5 [shape = 'u8[4096]{0}', space=vmem, size = 0x1000, scoped, tag = 'input window, operand 3, single buffered']
    #allocation6 [shape = 's32[1]{0}', space=sflag, size = 0x4, scoped, tag = 'scoped memory for tpu_custom_call.1']
    #allocation7 [shape = 'u8[8192]{0}', space=vmem, size = 0x2000, scoped, tag = 'output window, operand 0']
    %9 = vsyncpa [#allocation3], 0
    %10 = vsyncpa [#allocation6], 0
    %11 = vsyncpa [#allocation4], 0
    %s12 = scalar_lea.sflag [#allocation4], 1
    %13 = vsyncpa %s12, 0
    loop: start=0, step=1, limit=4
    $region2: #{tpu_custom_call.1} parent=1 // loop_pre_header
      _
    $region3: #{tpu_custom_call.1} parent=1 // loop_header
      %s15 = sphi 0, %s19
      %p16 = scmp.ge.s32.totalorder %s15, 4
      %s22 = sphi 0, %s34
      %s23 = sphi 0, %s30
      %s24 = sphi 0, %s22
      %s25 = sphi 0, %s23
      %s26 = sphi 0, %s24
      %s27 = sphi 0, %s25
      %s39 = sphi 0, %s41
      %s42 = sphi 0, %s39
      %s43 = sphi 0, %s42
      %s59 = sphi 0, %s43
      %s63 = sphi 0, %s63
      %s65 = sphi 0, %s63
      %s66 = sphi 0, %s65
      %s80 = sphi 0, %s66
      %s84 = sphi 0, %s84
      %s86 = sphi 0, %s84
      %s87 = sphi 0, %s86
      %s101 = sphi 0, %s87
      %s105 = sphi 0, %s105
      %s107 = sphi 0, %s105
      %s108 = sphi 0, %s107
      %s122 = sphi 0, %s108
      %s130 = sphi 0, %s132
      %s133 = sphi 0, %s130
      %s134 = sphi 0, %s133
      %s150 = sphi 0, %s134
    $region4: #{tpu_custom_call.1} parent=1 // loop_header_branch
      %18 = sbr.rel (%p16) target = $region8
    $region5: #{tpu_custom_call.1} parent=1 // loop_body
      %s20 = ssub.s32 %s15, 1
      %s21 = ssub.s32 %s15, 2
      %s28 = sadd.s32 1, %s23
      %p29 = scmp.ge.s32.totalorder %s28, 1
      %s30 = scalar_select %p29, 0, %s28
      %s31 = sadd.s32 1, %s22
      %s32 = scalar_select %p29, %s31, %s22
      %p33 = scmp.ge.s32.totalorder %s32, 2
      %s34 = scalar_select %p33, 0, %s32
      %s35 = ssub.s32 %s22, %s34
      %s36 = ssub.s32 %s23, %s30
      %s37 = sor.u32 %s35, %s36
      %p38 = scmp.eq.s32.totalorder %s37, 0
      %s40 = sadd.s32 %s39, 1
      %s41 = scalar_select %p38, %s39, %s40
      %p44 = pneg %p38
      %p45 = scmp.eq.s32.totalorder %s15, 1
      %p46 = por %p44, %p45
      %p47 = scmp.ne.s32.totalorder %s39, %s42
      %p48 = scmp.eq.s32.totalorder %s15, 0
      %p49 = por %p47, %p48
      %p50 = scmp.ne.s32.totalorder %s39, %s42
      %p51 = scmp.eq.s32.totalorder %s20, 1
      %p52 = por %p50, %p51
      %p53 = scmp.ne.s32.totalorder %s42, %s43
      %p54 = scmp.eq.s32.totalorder %s20, 0
      %p55 = por %p53, %p54
      %p56 = scmp.ne.s32.totalorder %s42, %s43
      %p57 = scmp.eq.s32.totalorder %s21, 1
      %p58 = por %p56, %p57
      %p60 = scmp.ne.s32.totalorder %s43, %s59
      %p61 = scmp.eq.s32.totalorder %s21, 0
      %p62 = por %p60, %p61
      %s64 = sadd.s32 %s63, 1
      %p67 = scmp.eq.s32.totalorder %s15, 1
      %p68 = scmp.ne.s32.totalorder %s63, %s65
      %p69 = scmp.eq.s32.totalorder %s15, 0
      %p70 = por %p68, %p69
      %p71 = scmp.ne.s32.totalorder %s63, %s65
      %p72 = scmp.eq.s32.totalorder %s20, 1
      %p73 = por %p71, %p72
      %p74 = scmp.ne.s32.totalorder %s65, %s66
      %p75 = scmp.eq.s32.totalorder %s20, 0
      %p76 = por %p74, %p75
      %p77 = scmp.ne.s32.totalorder %s65, %s66
      %p78 = scmp.eq.s32.totalorder %s21, 1
      %p79 = por %p77, %p78
      %p81 = scmp.ne.s32.totalorder %s66, %s80
      %p82 = scmp.eq.s32.totalorder %s21, 0
      %p83 = por %p81, %p82
      %s85 = sadd.s32 %s84, 1
      %p88 = scmp.eq.s32.totalorder %s15, 1
      %p89 = scmp.ne.s32.totalorder %s84, %s86
      %p90 = scmp.eq.s32.totalorder %s15, 0
      %p91 = por %p89, %p90
      %p92 = scmp.ne.s32.totalorder %s84, %s86
      %p93 = scmp.eq.s32.totalorder %s20, 1
      %p94 = por %p92, %p93
      %p95 = scmp.ne.s32.totalorder %s86, %s87
      %p96 = scmp.eq.s32.totalorder %s20, 0
      %p97 = por %p95, %p96
      %p98 = scmp.ne.s32.totalorder %s86, %s87
      %p99 = scmp.eq.s32.totalorder %s21, 1
      %p100 = por %p98, %p99
      %p102 = scmp.ne.s32.totalorder %s87, %s101
      %p103 = scmp.eq.s32.totalorder %s21, 0
      %p104 = por %p102, %p103
      %s106 = sadd.s32 %s105, 1
      %p109 = scmp.eq.s32.totalorder %s15, 1
      %p110 = scmp.ne.s32.totalorder %s105, %s107
      %p111 = scmp.eq.s32.totalorder %s15, 0
      %p112 = por %p110, %p111
      %p113 = scmp.ne.s32.totalorder %s105, %s107
      %p114 = scmp.eq.s32.totalorder %s20, 1
      %p115 = por %p113, %p114
      %p116 = scmp.ne.s32.totalorder %s107, %s108
      %p117 = scmp.eq.s32.totalorder %s20, 0
      %p118 = por %p116, %p117
      %p119 = scmp.ne.s32.totalorder %s107, %s108
      %p120 = scmp.eq.s32.totalorder %s21, 1
      %p121 = por %p119, %p120
      %p123 = scmp.ne.s32.totalorder %s108, %s122
      %p124 = scmp.eq.s32.totalorder %s21, 0
      %p125 = por %p123, %p124
      %s126 = ssub.s32 %s22, %s34
      %s127 = ssub.s32 %s23, %s30
      %s128 = sor.u32 %s126, %s127
      %p129 = scmp.eq.s32.totalorder %s128, 0
      %s131 = sadd.s32 %s130, 1
      %s132 = scalar_select %p129, %s130, %s131
      %p135 = pneg %p129
      %p136 = scmp.eq.s32.totalorder %s15, 1
      %p137 = por %p135, %p136
      %p138 = scmp.ne.s32.totalorder %s130, %s133
      %p139 = scmp.eq.s32.totalorder %s15, 0
      %p140 = por %p138, %p139
      %p141 = scmp.ne.s32.totalorder %s130, %s133
      %p142 = scmp.eq.s32.totalorder %s20, 1
      %p143 = por %p141, %p142
      %p144 = scmp.ne.s32.totalorder %s133, %s134
      %p145 = scmp.eq.s32.totalorder %s20, 0
      %p146 = por %p144, %p145
      %p147 = scmp.ne.s32.totalorder %s133, %s134
      %p148 = scmp.eq.s32.totalorder %s21, 1
      %p149 = por %p147, %p148
      %p151 = scmp.ne.s32.totalorder %s134, %s150
      %p152 = scmp.eq.s32.totalorder %s21, 0
      %p153 = por %p151, %p152
      %p154 = scmp.le.s32.totalorder 1, %s15
      %p155 = scmp.lt.s32.totalorder %s15, 3
      %p156 = pnand %p154, %p155
      %p157 = pneg %p156
      // Predicated region
      $region9: #{tpu_custom_call.1} parent=5 // pred_check
        _
      $region10: #{tpu_custom_call.1} parent=5 // pred_check_branch
        %159 = sbr.rel (%p156) target = $region12
      $region11: #{tpu_custom_call.1} parent=5 // pred_region
        %s160 = ssub.s32 %s15, 1
        // Predicated region
        $region13: #{tpu_custom_call.1} parent=11 // pred_check
          %p161 = pneg %p76
        $region14: #{tpu_custom_call.1} parent=11 // pred_check_branch
          %163 = sbr.rel (%p161) target = $region16
        $region15: #{tpu_custom_call.1} parent=11 // pred_region
          %165 = vsyncadd [#allocation3], 0
          %s166 = sshll.u32 %s1, 4
          %s167 = int_to_ptr.hbm [resolvable:$true] %s166
          %s168 = sshll.u32 [#allocation2], 4
          %s169 = int_to_ptr.vmem [resolvable:$true] %s168
          %174 = dma.hbm_to_vmem [thread:$0]  %s167, 2048, %s169, [#allocation3], 128, 128, 8
        $region16: #{tpu_custom_call.1} parent=11 // pred_fallthru
          _
        // Predicated region
        $region17: #{tpu_custom_call.1} parent=11 // pred_check
          %p175 = pneg %p97
        $region18: #{tpu_custom_call.1} parent=11 // pred_check_branch
          %177 = sbr.rel (%p175) target = $region20
        $region19: #{tpu_custom_call.1} parent=11 // pred_region
          _
        $region20: #{tpu_custom_call.1} parent=11 // pred_fallthru
          _
        // Predicated region
        $region21: #{tpu_custom_call.1} parent=11 // pred_check
          %p178 = pneg %p118
        $region22: #{tpu_custom_call.1} parent=11 // pred_check_branch
          %180 = sbr.rel (%p178) target = $region24
        $region23: #{tpu_custom_call.1} parent=11 // pred_region
          %182 = vsyncadd [#allocation6], 0
          %s184 = sshll.u32 %s3, 4
          %s185 = int_to_ptr.hbm [resolvable:$true] %s184
          %s186 = sshll.u32 [#allocation5], 4
          %s187 = int_to_ptr.vmem [resolvable:$true] %s186
          %189 = dma.hbm_to_vmem [thread:$0]  %s185, 128, %s187, [#allocation6]
        $region24: #{tpu_custom_call.1} parent=11 // pred_fallthru
          _
      $region12: #{tpu_custom_call.1} parent=5 // pred_fallthru
        _
      %p190 = scmp.lt.s32.totalorder %s15, 2
      // Predicated region
      $region25: #{tpu_custom_call.1} parent=5 // pred_check
        %p191 = pneg %p190
      $region26: #{tpu_custom_call.1} parent=5 // pred_check_branch
        %193 = sbr.rel (%p191) target = $region28
      $region27: #{tpu_custom_call.1} parent=5 // pred_region
        // Predicated region
        $region29: #{tpu_custom_call.1} parent=27 // pred_check
          %p194 = pneg %p49
        $region30: #{tpu_custom_call.1} parent=27 // pred_check_branch
          %196 = sbr.rel (%p194) target = $region32
        $region31: #{tpu_custom_call.1} parent=27 // pred_region
          %p197 = scmp.lt.s32.totalorder %s22, 1
          %s198 = scalar_select %p197, %s22, 1
          %p199 = scmp.lt.s32.totalorder %s23, 0
          %s200 = scalar_select %p199, %s23, 0
          %s201 = sadd.s32 %s200, %s198
          %s202 = smul.addr %s201, 4
          %s203 = scalar_lea.vmem %s0, %s202
        $region32: #{tpu_custom_call.1} parent=27 // pred_fallthru
          _
      $region28: #{tpu_custom_call.1} parent=5 // pred_fallthru
        _
      %p204 = scmp.le.s32.totalorder 1, %s15
      %p205 = scmp.lt.s32.totalorder %s15, 3
      %p206 = pnand %p204, %p205
      %p207 = pneg %p206
      // Predicated region
      $region33: #{tpu_custom_call.1} parent=5 // pred_check
        _
      $region34: #{tpu_custom_call.1} parent=5 // pred_check_branch
        %209 = sbr.rel (%p206) target = $region36
      $region35: #{tpu_custom_call.1} parent=5 // pred_region
        %s210 = ssub.s32 %s15, 1
        // Predicated region
        $region37: #{tpu_custom_call.1} parent=35 // pred_check
          %p211 = pneg %p76
        $region38: #{tpu_custom_call.1} parent=35 // pred_check_branch
          %213 = sbr.rel (%p211) target = $region40
        $region39: #{tpu_custom_call.1} parent=35 // pred_region
          %215 = dma.done [#allocation3], 2048
        $region40: #{tpu_custom_call.1} parent=35 // pred_fallthru
          _
        // Predicated region
        $region41: #{tpu_custom_call.1} parent=35 // pred_check
          %p216 = pneg %p118
        $region42: #{tpu_custom_call.1} parent=35 // pred_check_branch
          %218 = sbr.rel (%p216) target = $region44
        $region43: #{tpu_custom_call.1} parent=35 // pred_region
          %220 = dma.done [#allocation6], 128
        $region44: #{tpu_custom_call.1} parent=35 // pred_fallthru
          _
        %p221 = scmp.lt.s32.totalorder %s24, 1
        %s222 = scalar_select %p221, %s24, 1
        %p223 = scmp.lt.s32.totalorder %s25, 0
        %s224 = scalar_select %p223, %s25, 0
        %s225 = sadd.s32 %s224, %s222
        %s226 = smul.addr %s225, 4
        %s227 = scalar_lea.vmem %s0, %s226
        %p228 = pneg %p55
        %p229 = pneg %p52
        %p230 = pneg %p76
        %p231 = pneg %p73
        %p232 = pneg %p97
        %p233 = pneg %p94
        %p234 = pneg %p118
        %p235 = pneg %p115
        %p236 = pneg %p146
        %p237 = pneg %p143
        %s238 = sand.u32 %s133, 1
        %s239 = scalar_lea.sflag [#allocation4], %s238
        %s240 = sand.u32 %s133, 1
        %s241 = smul.addr %s240, 8
        %s242 = scalar_lea.vmem [#allocation7], %s241
        %p243 = scmp.lt.s32.totalorder %s24, 1
        %s244 = scalar_select %p243, %s24, 1
        %p245 = scmp.lt.s32.totalorder %s25, 0
        %s246 = scalar_select %p245, %s25, 0
        %s247 = sadd.s32 %s246, %s244
        %s248 = smul.addr %s247, 4
        %s249 = scalar_lea.vmem %s0, %s248
        %v250 = vld [vmem:[%s249] sm:$0xf]
        %v251 = vld [vmem:[#allocation2] sm:$0xff]
        %v252 = vld [vmem:[#allocation2 + $0x8] sm:$0xff]
        %v253 = vld [vmem:[#allocation2 + $0x10] sm:$0xff]
        %v254 = vld [vmem:[#allocation2 + $0x18] sm:$0xff]
        %v255 = vld [vmem:[#allocation2 + $0x20] sm:$0xff]
        %v256 = vld [vmem:[#allocation2 + $0x28] sm:$0xff]
        %v257 = vld [vmem:[#allocation2 + $0x30] sm:$0xff]
        %v258 = vld [vmem:[#allocation2 + $0x38] sm:$0xff]
        %v259 = vld [vmem:[#allocation2 + $0x40] sm:$0xff]
        %v260 = vld [vmem:[#allocation2 + $0x48] sm:$0xff]
        %v261 = vld [vmem:[#allocation2 + $0x50] sm:$0xff]
        %v262 = vld [vmem:[#allocation2 + $0x58] sm:$0xff]
        %v263 = vld [vmem:[#allocation2 + $0x60] sm:$0xff]
        %v264 = vld [vmem:[#allocation2 + $0x68] sm:$0xff]
        %v265 = vld [vmem:[#allocation2 + $0x70] sm:$0xff]
        %v266 = vld [vmem:[#allocation2 + $0x78] sm:$0xff]
        %267 = vmatpush.msra.mxu0 %v266
        %268 = vmatpush.msra.mxu0 %v265
        %269 = vmatpush.msra.mxu0 %v264
        %270 = vmatpush.msra.mxu0 %v263
        %271 = vmatpush.msra.mxu0 %v262
        %272 = vmatpush.msra.mxu0 %v261
        %273 = vmatpush.msra.mxu0 %v260
        %274 = vmatpush.msra.mxu0 %v259
        %275 = vmatpush.msra.mxu0 %v258
        %276 = vmatpush.msra.mxu0 %v257
        %277 = vmatpush.msra.mxu0 %v256
        %278 = vmatpush.msra.mxu0 %v255
        %279 = vmatpush.msra.mxu0 %v254
        %280 = vmatpush.msra.mxu0 %v253
        %281 = vmatpush.msra.mxu0 %v252
        %282 = vmatpush.msra.mxu0 %v251
        %283 = vmatmul.f32.gmra.mxu0 %v250
        %v284 = vpop.f32.mrf.mxu0
        %v285 = vadd.f32 0.0, %v284
        %286 = vdwg.mxu0
        %v287 = vld [vmem:[%s2] sm:$0xff]
        %v288 = vld [vmem:[#allocation5] sm:$0xff]
        %vm289 = vcmask 31744
        %v291 = vsel %vm289, %v287, 0
        %vm293 = vcmask 1043456
        %v295 = vsel %vm293, %v285, 0
        %297 = vmatpush.msra.mxu0 0.0
        %298 = vmatpush.msra.mxu0 0.0
        %299 = vmatpush.msra.mxu0 0.0
        %300 = vmatpush.msra.mxu0 0.0
        %301 = vmatpush.msra.mxu0 0.0
        %302 = vmatpush.msra.mxu0 0.0
        %303 = vmatpush.msra.mxu0 0.0
        %304 = vmatpush.msra.mxu0 0.0
        %305 = vmatpush.msra.mxu0 0.0
        %306 = vmatpush.msra.mxu0 0.0
        %307 = vmatpush.msra.mxu0 0.0
        %308 = vmatpush.msra.mxu0 0.0
        %309 = vmatpush.msra.mxu0 0.0
        %310 = vmatpush.msra.mxu0 0.0
        %311 = vmatpush.msra.mxu0 0.0
        %312 = vmatpush.msra.mxu0 %v295
        %313 = vmatmul.f32.gmra.mxu0 %v291
        %v314 = vpop.f32.mrf.mxu0
        %v315 = vadd.f32 %v288, %v314
        %316 = vdwg.mxu0
        %v317 = vmax.f32 %v315, 0.0
        %318 = vst [vmem:[%s242] sm:$0xff] %v317
        %s319 = sand.u32 %s133, 1
        %s320 = scalar_lea.sflag [#allocation4], %s319
        %s321 = sand.u32 %s133, 1
        %s322 = smul.addr %s321, 8
        %s323 = scalar_lea.vmem [#allocation7], %s322
        // Predicated region
        $region45: #{tpu_custom_call.1} parent=35 // pred_check
          %p324 = pneg %p143
        $region46: #{tpu_custom_call.1} parent=35 // pred_check_branch
          %326 = sbr.rel (%p324) target = $region48
        $region47: #{tpu_custom_call.1} parent=35 // pred_region
          %328 = vsyncadd %s320, 0
          %s329 = sadd.s32 %s25, %s24
          %s330 = smul.addr %s329, 8
          %s331 = scalar_lea.hbm %s4, %s330
          %s333 = sshll.u32 %s323, 4
          %s334 = int_to_ptr.vmem [resolvable:$true] %s333
          %s335 = sshll.u32 %s331, 4
          %s336 = int_to_ptr.hbm [resolvable:$true] %s335
          %338 = dma.vmem_to_hbm [thread:$0]  %s334, 128, %s336, %s320
        $region48: #{tpu_custom_call.1} parent=35 // pred_fallthru
          _
      $region36: #{tpu_custom_call.1} parent=5 // pred_fallthru
        _
      %p339 = scmp.le.s32.totalorder 2, %s15
      // Predicated region
      $region49: #{tpu_custom_call.1} parent=5 // pred_check
        %p340 = pneg %p339
      $region50: #{tpu_custom_call.1} parent=5 // pred_check_branch
        %342 = sbr.rel (%p340) target = $region52
      $region51: #{tpu_custom_call.1} parent=5 // pred_region
        %s343 = ssub.s32 %s15, 2
        // Predicated region
        $region53: #{tpu_custom_call.1} parent=51 // pred_check
          %p344 = pneg %p149
        $region54: #{tpu_custom_call.1} parent=51 // pred_check_branch
          %346 = sbr.rel (%p344) target = $region56
        $region55: #{tpu_custom_call.1} parent=51 // pred_region
          %s347 = sand.u32 %s134, 1
          %s348 = scalar_lea.sflag [#allocation4], %s347
          %s349 = sand.u32 %s134, 1
          %s350 = smul.addr %s349, 8
          %s351 = scalar_lea.vmem [#allocation7], %s350
          %353 = dma.done %s348, 128
        $region56: #{tpu_custom_call.1} parent=51 // pred_fallthru
          _
      $region52: #{tpu_custom_call.1} parent=5 // pred_fallthru
        _
    $region6: #{tpu_custom_call.1} parent=1 // loop_footer
      %s19 = sadd.s32 1, %s15
    $region7: #{tpu_custom_call.1} parent=1 // loop_footer_branch
      %14 = sbr.rel target = $region3
    $region8: #{tpu_custom_call.1} parent=1 // loop_exit
      _
    %354 = vsyncpa [#allocation3], 1
    %s355 = scalar_lea.sflag [#allocation3], 1
    %356 = vsyncpa %s355, 1
    %357 = vsyncpa [#allocation6], 1
    %358 = vsyncpa [#allocation4], 1
    %s359 = scalar_lea.sflag [#allocation4], 1
    %360 = vsyncpa %s359, 1

</llo_original>
